<compile_context>
chip_gen: v7x
topology: tpu7x:2x2x1
jax: 0.10.0
libtpu: 0.0.40
codegen_flags: <defaults>
</compile_context>

<pallas_src>
import jax
import jax.numpy as jnp
from jax.experimental import pallas as pl
from jax.experimental.pallas import tpu as pltpu


def _make_divisible(ch, divisor=8, min_ch=None):
    if min_ch is None:
        min_ch = divisor
    new_ch = max(min_ch, int(ch + divisor / 2) // divisor * divisor)
    if new_ch < 0.9 * ch:
        new_ch += divisor
    return new_ch


def _se_kernel(x_ref, w1t_ref, b1_ref, w2t_ref, b2_ref, o_ref):
    """One grid step: Nb independent samples; block layout (Nb, C, HW)."""
    inv_hw = 1.0 / x_ref.shape[-1]
    # Global average pool: the f32 upcast is consumed directly by the lane
    # reduction -- the block is never materialized as a full f32 temp.
    pooled = jnp.sum(x_ref[...].astype(jnp.float32), axis=-1) * inv_hw       # (Nb, C)
    # fc1 (1x1 conv) + ReLU, f32 math.
    s1 = jnp.dot(pooled, w1t_ref[...],
                 preferred_element_type=jnp.float32) + b1_ref[...]           # (Nb, Csq)
    s1 = jnp.maximum(s1, 0.0)
    # fc2 (1x1 conv) + hardsigmoid.
    s2 = jnp.dot(s1, w2t_ref[...],
                 preferred_element_type=jnp.float32) + b2_ref[...]           # (Nb, C)
    s2 = jnp.clip(s2 * (1.0 / 6.0) + 0.5, 0.0, 1.0)
    # Broadcast scale over the spatial (lane) axis in the I/O dtype (bf16-native
    # on v6e/v7x, f32 for f32 inputs, auto-upcast on v5e).
    o_ref[...] = (x_ref[...] * s2[:, :, None].astype(x_ref.dtype)).astype(o_ref.dtype)


def _const_spec(shape, pipeline_mode):
    index_map = lambda n: (0,) * len(shape)
    if pipeline_mode is None:
        return pl.BlockSpec(shape, index_map)
    return pl.BlockSpec(shape, index_map, pipeline_mode=pipeline_mode)


def se_block(x, w1, b1, w2, b2, *,
             target_block_bytes=4 * 1024 * 1024,
             min_block_bytes=1024 * 1024,
             min_grid_steps=8):
    """SEBlock forward.  x: (N,C,H,W); w1: (Csq,C); b1: (Csq,); w2: (C,Csq); b2: (C,)."""
    N, C, H, W = x.shape
    Csq = w1.shape[0]
    HW = H * W
    itemsize = jnp.dtype(x.dtype).itemsize
    per_sample = C * HW * itemsize

    # Samples per grid step:
    #   * block <= target_block_bytes (VMEM / double-buffer budget; 2-4 MiB is
    #     safe on v7x's 64 MiB VMEM, 4-8 MiB fine on v5e/v6e),
    #   * prefer >= min_grid_steps steps (>= 4 per v7x core) for pipelining,
    #   * never below ~min_block_bytes (per-step overhead dominates tiny blocks).
    nb_budget = max(1, target_block_bytes // per_sample)
    nb_steps = max(1, N // min_grid_steps)
    nb_floor = max(1, min_block_bytes // per_sample)
    nb = int(min(N, nb_budget, max(nb_steps, nb_floor)))
    grid = (pl.cdiv(N, nb),)

    xr = x.reshape(N, C, HW)                        # free reshape, no HBM copy
    # Pre-transpose weights so the kernel does (Nb, C) @ (C, Csq) on the MXU.
    w1t = jnp.transpose(w1).astype(jnp.float32)     # (C, Csq)
    w2t = jnp.transpose(w2).astype(jnp.float32)     # (Csq, C)
    b1r = b1.reshape(1, Csq).astype(jnp.float32)
    b2r = b2.reshape(1, C).astype(jnp.float32)

    w_bytes = 4 * (w1t.size + w2t.size + b1r.size + b2r.size)
    # Honest scheduling hint: one read + one write of x, weights once, tiny FLOPs.
    cost = pl.CostEstimate(
        flops=int(4 * N * C * Csq + 2 * N * C * HW),
        transcendentals=0,
        bytes_accessed=int(2 * N * per_sample + w_bytes),
    )
    # VMEM budget: 2x double-buffered input + 2x output blocks + weights + slack.
    block_bytes = nb * per_sample
    vmem_need = 4 * block_bytes + 2 * w_bytes + (2 << 20)
    vmem_limit = int(min(64 * 2 ** 20, max(32 * 2 ** 20, vmem_need)))

    def run(single_buffer_weights):
        pipe = pl.Buffered(1) if single_buffer_weights else None
        fn = pl.pallas_call(
            _se_kernel,
            out_shape=jax.ShapeDtypeStruct((N, C, HW), x.dtype),
            grid_spec=pltpu.PrefetchScalarGridSpec(
                num_scalar_prefetch=0,
                grid=grid,
                in_specs=[
                    pl.BlockSpec((nb, C, HW), lambda n: (n, 0, 0)),   # x slab
                    _const_spec((C, Csq), pipe),                      # w1^T (replicated)
                    _const_spec((1, Csq), pipe),                      # b1
                    _const_spec((Csq, C), pipe),                      # w2^T
                    _const_spec((1, C), pipe),                        # b2
                ],
                out_specs=pl.BlockSpec((nb, C, HW), lambda n: (n, 0, 0)),
            ),
            compiler_params=pltpu.CompilerParams(
                dimension_semantics=("parallel",),
                vmem_limit_bytes=vmem_limit),
            cost_estimate=cost,
        )
        return fn(xr, w1t, b1r, w2t, b2r)

    try:
        out = jax.block_until_ready(run(single_buffer_weights=True))
    except Exception:
        # pipeline_mode / pl.Buffered unsupported in this build: fall back to the
        # default (still constant-index, so no re-DMA) double-buffered weights.
        out = jax.block_until_ready(run(single_buffer_weights=False))
    return out.reshape(N, C, H, W)


def se_block_ref(x, w1, b1, w2, b2):
    """Pure-JAX reference matching the PyTorch forward (f32 math)."""
    xf = x.astype(jnp.float32)
    pooled = jnp.mean(xf, axis=(2, 3))                                 # (N, C)
    s1 = jax.nn.relu(pooled @ w1.T + b1)                               # (N, Csq)
    s2 = s1 @ w2.T + b2                                                # (N, C)
    s2 = jnp.clip(s2 / 6.0 + 0.5, 0.0, 1.0)                            # hardsigmoid
    return s2[:, :, None, None] * xf


def _make_params(key, C, Csq):
    k1, k2, k3, k4 = jax.random.split(key, 4)
    w1 = jax.random.normal(k1, (Csq, C), dtype=jnp.float32) * 0.2      # fc1.weight
    b1 = jax.random.normal(k2, (Csq,), dtype=jnp.float32) * 0.1        # fc1.bias
    w2 = jax.random.normal(k3, (C, Csq), dtype=jnp.float32) * 0.2      # fc2.weight
    b2 = jax.random.normal(k4, (C,), dtype=jnp.float32) * 0.1          # fc2.bias
    return w1, b1, w2, b2


if __name__ == "__main__":
    key = jax.random.PRNGKey(0)
    k_a, k_b, k_c, k_p1, k_p2 = jax.random.split(key, 5)

    # --- case 1: f32, 16x16 spatial (lane-aligned HW = 256) ---
    N, C, H, W = 2, 16, 16, 16
    Csq = _make_divisible(C // 4, 8)                                   # = 8
    x = jax.random.normal(k_a, (N, C, H, W), dtype=jnp.float32)
    w1, b1, w2, b2 = _make_params(k_p1, C, Csq)
    out = se_block(x, w1, b1, w2, b2)
    ref = se_block_ref(x, w1, b1, w2, b2)
    assert out.shape == (N, C, H, W)
    assert jnp.allclose(out, ref, atol=1e-5, rtol=1e-5), "f32 16x16 mismatch"

    # --- case 2: f32, small spatial (HW = 49 < 128), native layout, no transposes ---
    N2, C2, H2, W2 = 3, 32, 7, 7
    Csq2 = _make_divisible(C2 // 4, 8)                                 # = 8
    x2 = jax.random.normal(k_b, (N2, C2, H2, W2), dtype=jnp.float32)
    w1b, b1b, w2b, b2b = _make_params(k_p2, C2, Csq2)
    out2 = se_block(x2, w1b, b1b, w2b, b2b)
    ref2 = se_block_ref(x2, w1b, b1b, w2b, b2b)
    assert out2.shape == (N2, C2, H2, W2)
    assert jnp.allclose(out2, ref2, atol=1e-5, rtol=1e-5), "f32 7x7 mismatch"

    # --- case 3: bf16 I/O (halves HBM traffic); f32 pooling/FC math, bf16 scale ---
    x_bf16 = x.astype(jnp.bfloat16)
    out3 = se_block(x_bf16, w1, b1, w2, b2)
    ref3 = se_block_ref(x_bf16, w1, b1, w2, b2)
    assert out3.dtype == jnp.bfloat16
    assert jnp.allclose(out3.astype(jnp.float32), ref3, atol=3e-2, rtol=3e-2), \
        "bf16 mismatch"

    # --- case 4: multi-step grid with a PARTIAL last block (N=5, nb=2 -> 3 steps).
    # Exercises the no-pad edge handling: last block's extra row reads stale data,
    # rows are independent, and the out-of-bounds write is dropped by Pallas.
    N4 = 5
    x4 = jax.random.normal(k_c, (N4, C, H, W), dtype=jnp.float32)
    per_sample = C * H * W * 4
    out4 = se_block(x4, w1, b1, w2, b2,
                    target_block_bytes=2 * per_sample,
                    min_block_bytes=2 * per_sample)
    ref4 = se_block_ref(x4, w1, b1, w2, b2)
    assert out4.shape == (N4, C, H, W)
    assert jnp.allclose(out4, ref4, atol=1e-5, rtol=1e-5), "partial-block mismatch"

    print("KERNEL_OK")
</pallas_src>

<mosaic_0001>
module attributes {stable_mosaic.version = 11 : i64} {
  func.func @_se_kernel(%arg0: i32, %arg1: memref<2x16x256xf32, #tpu.memory_space<vmem>>, %arg2: memref<16x8xf32, #tpu.memory_space<vmem>>, %arg3: memref<1x8xf32, #tpu.memory_space<vmem>>, %arg4: memref<8x16xf32, #tpu.memory_space<vmem>>, %arg5: memref<1x16xf32, #tpu.memory_space<vmem>>, %arg6: memref<2x16x256xf32, #tpu.memory_space<vmem>>) attributes {dimension_semantics = [#tpu.dimension_semantics<parallel>], iteration_bounds = array<i64: 1>, scalar_prefetch = 0 : i64, scratch_operands = 0 : i64, tpu.core_type = #tpu.core_type<tc>, window_params = [{transform_indices = @transform_0, window_bounds = array<i64: 2, 16, 256>}, {pipeline_mode = #tpu.pipeline_mode<synchronous>, transform_indices = @transform_1, window_bounds = array<i64: 16, 8>}, {pipeline_mode = #tpu.pipeline_mode<synchronous>, transform_indices = @transform_2, window_bounds = array<i64: 1, 8>}, {pipeline_mode = #tpu.pipeline_mode<synchronous>, transform_indices = @transform_3, window_bounds = array<i64: 8, 16>}, {pipeline_mode = #tpu.pipeline_mode<synchronous>, transform_indices = @transform_4, window_bounds = array<i64: 1, 16>}, {transform_indices = @transform_5, window_bounds = array<i64: 2, 16, 256>}]} {
    %c0 = arith.constant 0 : index
    %c0_0 = arith.constant 0 : index
    %c0_1 = arith.constant 0 : index
    %0 = vector.load %arg1[%c0, %c0_0, %c0_1] : memref<2x16x256xf32, #tpu.memory_space<vmem>>, vector<2x16x256xf32>
    %cst = arith.constant dense<0.000000e+00> : vector<2x16xf32>
    %1 = vector.multi_reduction <add>, %0, %cst [2] : vector<2x16x256xf32> to vector<2x16xf32>
    %cst_2 = arith.constant 3.906250e-03 : f32
    %2 = vector.broadcast %cst_2 : f32 to vector<2x16xf32>
    %3 = arith.mulf %1, %2 : vector<2x16xf32>
    %c0_3 = arith.constant 0 : index
    %c0_4 = arith.constant 0 : index
    %4 = vector.load %arg2[%c0_3, %c0_4] : memref<16x8xf32, #tpu.memory_space<vmem>>, vector<16x8xf32>
    %cst_5 = arith.constant dense<0.000000e+00> : vector<2x8xf32>
    %5 = tpu.matmul %3, %4, %cst_5 {dimension_numbers = #tpu.dot_dimension_numbers<[1], [0], [0], [1], [0, 0, 1, 1], [], []>} : vector<2x16xf32>, vector<16x8xf32>, vector<2x8xf32> -> vector<2x8xf32>
    %c0_6 = arith.constant 0 : index
    %c0_7 = arith.constant 0 : index
    %6 = vector.load %arg3[%c0_6, %c0_7] : memref<1x8xf32, #tpu.memory_space<vmem>>, vector<1x8xf32>
    %7 = vector.broadcast %6 : vector<1x8xf32> to vector<2x8xf32>
    %8 = arith.addf %5, %7 : vector<2x8xf32>
    %cst_8 = arith.constant 0.000000e+00 : f32
    %9 = vector.broadcast %cst_8 : f32 to vector<2x8xf32>
    %10 = arith.maximumf %8, %9 : vector<2x8xf32>
    %c0_9 = arith.constant 0 : index
    %c0_10 = arith.constant 0 : index
    %11 = vector.load %arg4[%c0_9, %c0_10] : memref<8x16xf32, #tpu.memory_space<vmem>>, vector<8x16xf32>
    %cst_11 = arith.constant dense<0.000000e+00> : vector<2x16xf32>
    %12 = tpu.matmul %10, %11, %cst_11 {dimension_numbers = #tpu.dot_dimension_numbers<[1], [0], [0], [1], [0, 0, 1, 1], [], []>} : vector<2x8xf32>, vector<8x16xf32>, vector<2x16xf32> -> vector<2x16xf32>
    %c0_12 = arith.constant 0 : index
    %c0_13 = arith.constant 0 : index
    %13 = vector.load %arg5[%c0_12, %c0_13] : memref<1x16xf32, #tpu.memory_space<vmem>>, vector<1x16xf32>
    %14 = vector.broadcast %13 : vector<1x16xf32> to vector<2x16xf32>
    %15 = arith.addf %12, %14 : vector<2x16xf32>
    %cst_14 = arith.constant 0.166666672 : f32
    %16 = vector.broadcast %cst_14 : f32 to vector<2x16xf32>
    %17 = arith.mulf %15, %16 : vector<2x16xf32>
    %cst_15 = arith.constant 5.000000e-01 : f32
    %18 = vector.broadcast %cst_15 : f32 to vector<2x16xf32>
    %19 = arith.addf %17, %18 : vector<2x16xf32>
    %cst_16 = arith.constant 0.000000e+00 : f32
    %cst_17 = arith.constant 1.000000e+00 : f32
    %20 = vector.broadcast %cst_16 : f32 to vector<2x16xf32>
    %21 = arith.maximumf %20, %19 : vector<2x16xf32>
    %22 = vector.broadcast %cst_17 : f32 to vector<2x16xf32>
    %23 = arith.minimumf %22, %21 : vector<2x16xf32>
    %c0_18 = arith.constant 0 : index
    %c0_19 = arith.constant 0 : index
    %c0_20 = arith.constant 0 : index
    %24 = vector.load %arg1[%c0_18, %c0_19, %c0_20] : memref<2x16x256xf32, #tpu.memory_space<vmem>>, vector<2x16x256xf32>
    %25 = vector.shape_cast %23 : vector<2x16xf32> to vector<2x16x1xf32>
    %26 = vector.broadcast %25 : vector<2x16x1xf32> to vector<2x16x256xf32>
    %27 = arith.mulf %24, %26 : vector<2x16x256xf32>
    %c0_21 = arith.constant 0 : index
    %c0_22 = arith.constant 0 : index
    %c0_23 = arith.constant 0 : index
    %28 = vector.load %arg6[%c0_21, %c0_22, %c0_23] : memref<2x16x256xf32, #tpu.memory_space<vmem>>, vector<2x16x256xf32>
    tpu.vector_store %arg6[%c0_21, %c0_22, %c0_23], %27 {strides = array<i32>} : memref<2x16x256xf32, #tpu.memory_space<vmem>>, vector<2x16x256xf32>,
    return
  }
  func.func @transform_0(%arg0: i32) -> (i32, i32, i32) {
    %c0_i32 = arith.constant 0 : i32
    %c0_i32_0 = arith.constant 0 : i32
    %c0_i32_1 = arith.constant 0 : i32
    return %arg0, %c0_i32, %c0_i32_0 : i32, i32, i32
  }
  func.func @transform_1(%arg0: i32) -> (i32, i32) {
    %c0_i32 = arith.constant 0 : i32
    %c0_i32_0 = arith.constant 0 : i32
    %c0_i32_1 = arith.constant 0 : i32
    return %c0_i32, %c0_i32_0 : i32, i32
  }
  func.func @transform_2(%arg0: i32) -> (i32, i32) {
    %c0_i32 = arith.constant 0 : i32
    %c0_i32_0 = arith.constant 0 : i32
    %c0_i32_1 = arith.constant 0 : i32
    return %c0_i32, %c0_i32_0 : i32, i32
  }
  func.func @transform_3(%arg0: i32) -> (i32, i32) {
    %c0_i32 = arith.constant 0 : i32
    %c0_i32_0 = arith.constant 0 : i32
    %c0_i32_1 = arith.constant 0 : i32
    return %c0_i32, %c0_i32_0 : i32, i32
  }
  func.func @transform_4(%arg0: i32) -> (i32, i32) {
    %c0_i32 = arith.constant 0 : i32
    %c0_i32_0 = arith.constant 0 : i32
    %c0_i32_1 = arith.constant 0 : i32
    return %c0_i32, %c0_i32_0 : i32, i32
  }
  func.func @transform_5(%arg0: i32) -> (i32, i32, i32) {
    %c0_i32 = arith.constant 0 : i32
    %c0_i32_0 = arith.constant 0 : i32
    %c0_i32_1 = arith.constant 0 : i32
    return %arg0, %c0_i32, %c0_i32_0 : i32, i32, i32
  }
}

module attributes {stable_mosaic.version = 11 : i64} {
  func.func @_se_kernel(%arg0: i32, %arg1: memref<2x16x256xf32, #tpu.memory_space<vmem>>, %arg2: memref<16x8xf32, #tpu.memory_space<vmem>>, %arg3: memref<1x8xf32, #tpu.memory_space<vmem>>, %arg4: memref<8x16xf32, #tpu.memory_space<vmem>>, %arg5: memref<1x16xf32, #tpu.memory_space<vmem>>, %arg6: memref<2x16x256xf32, #tpu.memory_space<vmem>>) attributes {dimension_semantics = [#tpu.dimension_semantics<parallel>], iteration_bounds = array<i64: 1>, scalar_prefetch = 0 : i64, scratch_operands = 0 : i64, tpu.core_type = #tpu.core_type<tc>, window_params = [{transform_indices = @transform_0, window_bounds = array<i64: 2, 16, 256>}, {pipeline_mode = #tpu.pipeline_mode<synchronous>, transform_indices = @transform_1, window_bounds = array<i64: 16, 8>}, {pipeline_mode = #tpu.pipeline_mode<synchronous>, transform_indices = @transform_2, window_bounds = array<i64: 1, 8>}, {pipeline_mode = #tpu.pipeline_mode<synchronous>, transform_indices = @transform_3, window_bounds = array<i64: 8, 16>}, {pipeline_mode = #tpu.pipeline_mode<synchronous>, transform_indices = @transform_4, window_bounds = array<i64: 1, 16>}, {transform_indices = @transform_5, window_bounds = array<i64: 2, 16, 256>}]} {
    %c0 = arith.constant 0 : index
    %c0_0 = arith.constant 0 : index
    %c0_1 = arith.constant 0 : index
    %0 = vector.load %arg1[%c0, %c0_0, %c0_1] : memref<2x16x256xf32, #tpu.memory_space<vmem>>, vector<2x16x256xf32>
    %cst = arith.constant dense<0.000000e+00> : vector<2x16xf32>
    %1 = vector.multi_reduction <add>, %0, %cst [2] : vector<2x16x256xf32> to vector<2x16xf32>
    %cst_2 = arith.constant 3.906250e-03 : f32
    %2 = vector.broadcast %cst_2 : f32 to vector<2x16xf32>
    %3 = arith.mulf %1, %2 : vector<2x16xf32>
    %c0_3 = arith.constant 0 : index
    %c0_4 = arith.constant 0 : index
    %4 = vector.load %arg2[%c0_3, %c0_4] : memref<16x8xf32, #tpu.memory_space<vmem>>, vector<16x8xf32>
    %cst_5 = arith.constant dense<0.000000e+00> : vector<2x8xf32>
    %5 = tpu.matmul %3, %4, %cst_5 {dimension_numbers = #tpu.dot_dimension_numbers<[1], [0], [0], [1], [0, 0, 1, 1], [], []>} : vector<2x16xf32>, vector<16x8xf32>, vector<2x8xf32> -> vector<2x8xf32>
    %c0_6 = arith.constant 0 : index
    %c0_7 = arith.constant 0 : index
    %6 = vector.load %arg3[%c0_6, %c0_7] : memref<1x8xf32, #tpu.memory_space<vmem>>, vector<1x8xf32>
    %7 = vector.broadcast %6 : vector<1x8xf32> to vector<2x8xf32>
    %8 = arith.addf %5, %7 : vector<2x8xf32>
    %cst_8 = arith.constant 0.000000e+00 : f32
    %9 = vector.broadcast %cst_8 : f32 to vector<2x8xf32>
    %10 = arith.maximumf %8, %9 : vector<2x8xf32>
    %c0_9 = arith.constant 0 : index
    %c0_10 = arith.constant 0 : index
    %11 = vector.load %arg4[%c0_9, %c0_10] : memref<8x16xf32, #tpu.memory_space<vmem>>, vector<8x16xf32>
    %cst_11 = arith.constant dense<0.000000e+00> : vector<2x16xf32>
    %12 = tpu.matmul %10, %11, %cst_11 {dimension_numbers = #tpu.dot_dimension_numbers<[1], [0], [0], [1], [0, 0, 1, 1], [], []>} : vector<2x8xf32>, vector<8x16xf32>, vector<2x16xf32> -> vector<2x16xf32>
    %c0_12 = arith.constant 0 : index
    %c0_13 = arith.constant 0 : index
    %13 = vector.load %arg5[%c0_12, %c0_13] : memref<1x16xf32, #tpu.memory_space<vmem>>, vector<1x16xf32>
    %14 = vector.broadcast %13 : vector<1x16xf32> to vector<2x16xf32>
    %15 = arith.addf %12, %14 : vector<2x16xf32>
    %cst_14 = arith.constant 0.166666672 : f32
    %16 = vector.broadcast %cst_14 : f32 to vector<2x16xf32>
    %17 = arith.mulf %15, %16 : vector<2x16xf32>
    %cst_15 = arith.constant 5.000000e-01 : f32
    %18 = vector.broadcast %cst_15 : f32 to vector<2x16xf32>
    %19 = arith.addf %17, %18 : vector<2x16xf32>
    %cst_16 = arith.constant 0.000000e+00 : f32
    %cst_17 = arith.constant 1.000000e+00 : f32
    %20 = vector.broadcast %cst_16 : f32 to vector<2x16xf32>
    %21 = arith.maximumf %20, %19 : vector<2x16xf32>
    %22 = vector.broadcast %cst_17 : f32 to vector<2x16xf32>
    %23 = arith.minimumf %22, %21 : vector<2x16xf32>
    %c0_18 = arith.constant 0 : index
    %c0_19 = arith.constant 0 : index
    %c0_20 = arith.constant 0 : index
    %24 = vector.load %arg1[%c0_18, %c0_19, %c0_20] : memref<2x16x256xf32, #tpu.memory_space<vmem>>, vector<2x16x256xf32>
    %25 = vector.shape_cast %23 : vector<2x16xf32> to vector<2x16x1xf32>
    %26 = vector.broadcast %25 : vector<2x16x1xf32> to vector<2x16x256xf32>
    %27 = arith.mulf %24, %26 : vector<2x16x256xf32>
    %c0_21 = arith.constant 0 : index
    %c0_22 = arith.constant 0 : index
    %c0_23 = arith.constant 0 : index
    %28 = vector.load %arg6[%c0_21, %c0_22, %c0_23] : memref<2x16x256xf32, #tpu.memory_space<vmem>>, vector<2x16x256xf32>
    tpu.vector_store %arg6[%c0_21, %c0_22, %c0_23], %27 {strides = array<i32>} : memref<2x16x256xf32, #tpu.memory_space<vmem>>, vector<2x16x256xf32>,
    return
  }
  func.func @transform_0(%arg0: i32) -> (i32, i32, i32) {
    %c0_i32 = arith.constant 0 : i32
    %c0_i32_0 = arith.constant 0 : i32
    %c0_i32_1 = arith.constant 0 : i32
    return %arg0, %c0_i32, %c0_i32_0 : i32, i32, i32
  }
  func.func @transform_1(%arg0: i32) -> (i32, i32) {
    %c0_i32 = arith.constant 0 : i32
    %c0_i32_0 = arith.constant 0 : i32
    %c0_i32_1 = arith.constant 0 : i32
    return %c0_i32, %c0_i32_0 : i32, i32
  }
  func.func @transform_2(%arg0: i32) -> (i32, i32) {
    %c0_i32 = arith.constant 0 : i32
    %c0_i32_0 = arith.constant 0 : i32
    %c0_i32_1 = arith.constant 0 : i32
    return %c0_i32, %c0_i32_0 : i32, i32
  }
  func.func @transform_3(%arg0: i32) -> (i32, i32) {
    %c0_i32 = arith.constant 0 : i32
    %c0_i32_0 = arith.constant 0 : i32
    %c0_i32_1 = arith.constant 0 : i32
    return %c0_i32, %c0_i32_0 : i32, i32
  }
  func.func @transform_4(%arg0: i32) -> (i32, i32) {
    %c0_i32 = arith.constant 0 : i32
    %c0_i32_0 = arith.constant 0 : i32
    %c0_i32_1 = arith.constant 0 : i32
    return %c0_i32, %c0_i32_0 : i32, i32
  }
  func.func @transform_5(%arg0: i32) -> (i32, i32, i32) {
    %c0_i32 = arith.constant 0 : i32
    %c0_i32_0 = arith.constant 0 : i32
    %c0_i32_1 = arith.constant 0 : i32
    return %arg0, %c0_i32, %c0_i32_0 : i32, i32, i32
  }
}

</mosaic_0001>

<llo_original>
// kernel: tpu_custom_call.1
$region0: #{tpu_custom_call.1}
  #allocation0 [shape = 'u32[]', space=smem, size = 0x4, offset = 0x4, fixed_abs, tag = 'smem constant byte address 0x4 - core index']
  #allocation1 [shape = 'u32[144,128]{1,0:T(1,128)}', space=vmem, size = 0x12000, scoped, tag = 'internal scratch']
  %s0 = inlined_call_operand.hbm [shape: f32[2,16,256], index: 0, kind: input, shape index: {}]
  %s1 = inlined_call_operand.vmem [shape: f32[16,8], index: 1, kind: input, shape index: {}]
  %s2 = inlined_call_operand.vmem [shape: f32[1,8], index: 2, kind: input, shape index: {}]
  %s3 = inlined_call_operand.vmem [shape: f32[8,16], index: 3, kind: input, shape index: {}]
  %s4 = inlined_call_operand.vmem [shape: f32[1,16], index: 4, kind: input, shape index: {}]
  %s5 = inlined_call_operand.hbm [shape: f32[2,16,256], index: 5, kind: output, shape index: {}]
  %s6 = sld [smem:[#allocation0]]
  $region34: #{tpu_custom_call.1} parent=0
    _
  %s8 = ssub.s32 1, %s6
  %s9 = scalar_select 0, %s8, %s6
  $region1: #{tpu_custom_call.1} parent=0
    #allocation2 [shape = 'u8[32768]{0}', space=vmem, size = 0x8000, scoped, tag = 'input window, operand 0, single buffered']
    #allocation3 [shape = 's32[1]{0}', space=sflag, size = 0x4, scoped, tag = 'scoped memory for tpu_custom_call.1']
    #allocation4 [shape = 's32[1]{0}', space=sflag, size = 0x4, scoped, tag = 'scoped memory for tpu_custom_call.1']
    #allocation5 [shape = 'u8[32768]{0}', space=vmem, size = 0x8000, scoped, tag = 'output window, operand 0, single buffered']
    %10 = vsyncpa [#allocation3], 0
    %11 = vsyncpa [#allocation4], 0
    // Predicated region
    $region2: #{tpu_custom_call.1} parent=1 // pred_check
      _
    $region3: #{tpu_custom_call.1} parent=1 // pred_check_branch
      %13 = sbr.rel (0) target = $region5
    $region4: #{tpu_custom_call.1} parent=1 // pred_region
      %s15 = ssub.s32 1024, 1024
      %16 = vsyncadd [#allocation3], %s15
      %s17 = sshll.u32 [#allocation2], 4
      %s18 = int_to_ptr.vmem [resolvable:$true] %s17
      %23 = dma.hbm_to_vmem [thread:$0]  %s0, 1024, %s18, [#allocation3], 256, 256, 16
    $region5: #{tpu_custom_call.1} parent=1 // pred_fallthru
      _
    // Predicated region
    $region6: #{tpu_custom_call.1} parent=1 // pred_check
      _
    $region7: #{tpu_custom_call.1} parent=1 // pred_check_branch
      %25 = sbr.rel (0) target = $region9
    $region8: #{tpu_custom_call.1} parent=1 // pred_region
      _
    $region9: #{tpu_custom_call.1} parent=1 // pred_fallthru
      _
    // Predicated region
    $region10: #{tpu_custom_call.1} parent=1 // pred_check
      _
    $region11: #{tpu_custom_call.1} parent=1 // pred_check_branch
      %27 = sbr.rel (0) target = $region13
    $region12: #{tpu_custom_call.1} parent=1 // pred_region
      _
    $region13: #{tpu_custom_call.1} parent=1 // pred_fallthru
      _
    // Predicated region
    $region14: #{tpu_custom_call.1} parent=1 // pred_check
      _
    $region15: #{tpu_custom_call.1} parent=1 // pred_check_branch
      %29 = sbr.rel (0) target = $region17
    $region16: #{tpu_custom_call.1} parent=1 // pred_region
      _
    $region17: #{tpu_custom_call.1} parent=1 // pred_fallthru
      _
    // Predicated region
    $region18: #{tpu_custom_call.1} parent=1 // pred_check
      _
    $region19: #{tpu_custom_call.1} parent=1 // pred_check_branch
      %31 = sbr.rel (0) target = $region21
    $region20: #{tpu_custom_call.1} parent=1 // pred_region
      _
    $region21: #{tpu_custom_call.1} parent=1 // pred_fallthru
      _
    // Predicated region
    $region22: #{tpu_custom_call.1} parent=1 // pred_check
      _
    $region23: #{tpu_custom_call.1} parent=1 // pred_check_branch
      %33 = sbr.rel (0) target = $region25
    $region24: #{tpu_custom_call.1} parent=1 // pred_region
      %34 = dma.done [#allocation3], 1024
    $region25: #{tpu_custom_call.1} parent=1 // pred_fallthru
      _
    %v35 = vld [vmem:[#allocation2] sm:$0xff]
    %v36 = vld [vmem:[#allocation2 + $0x8] sm:$0xff]
    %v37 = vld [vmem:[#allocation2 + $0x10] sm:$0xff]
    %v38 = vld [vmem:[#allocation2 + $0x18] sm:$0xff]
    %v39 = vld [vmem:[#allocation2 + $0x20] sm:$0xff]
    %v40 = vld [vmem:[#allocation2 + $0x28] sm:$0xff]
    %v41 = vld [vmem:[#allocation2 + $0x30] sm:$0xff]
    %v42 = vld [vmem:[#allocation2 + $0x38] sm:$0xff]
    %v43 = vadd.f32 %v35, %v36
    %44 = vadd.xlane.f32.xlu0 %v43
    %v45 = vpop.xlane.xlu0 %44
    %v46 = vadd.f32 %v37, %v38
    %47 = vadd.xlane.f32.xlu0 %v46
    %v48 = vpop.xlane.xlu0 %47
    %v49 = vadd.f32 %v39, %v40
    %50 = vadd.xlane.f32.xlu0 %v49
    %v51 = vpop.xlane.xlu0 %50
    %v52 = vadd.f32 %v41, %v42
    %53 = vadd.xlane.f32.xlu0 %v52
    %v54 = vpop.xlane.xlu0 %53
    %v55 = vmul.f32 %v45, 0.00390625
    %v56 = vmul.f32 %v48, 0.00390625
    %v57 = vmul.f32 %v51, 0.00390625
    %v58 = vmul.f32 %v54, 0.00390625
    %v59 = vld [vmem:[%s1] sm:$0xff]
    %v60 = vld [vmem:[%s1 + $0x8] sm:$0xff]
    %v61 = vld [vmem:[%s2] sm:$0x1]
    %v63 = vlaneseq
    %v64 = vshrl.u32 %v63, 7
    %v65 = vsub.s32 0, %v64
    %v66 = vrot.slane %v61, %v65
    %v72 = vlaneseq
    %v73 = vand.u32 %v72, 127
    %v74 = vlaneseq
    %v75 = vshrl.u32 %v74, 7
    %v76 = vsub.s32 %v73, %v75
    %v77 = vrot.slane %v55, %v76
    %v78 = vadd.s32 %v73, 4294967288
    %v79 = vlaneseq
    %v80 = vshrl.u32 %v79, 7
    %v81 = vsub.s32 %v78, %v80
    %v82 = vrot.slane %v56, %v81
    %vm83 = vcmask 130112
    %v84 = vsel %vm83, %v82, %v77
    %v85 = vlaneseq
    %v86 = vshrl.u32 %v85, 7
    %v87 = vsub.s32 %v73, %v86
    %v88 = vrot.slane %v57, %v87
    %v89 = vlaneseq
    %v90 = vshrl.u32 %v89, 7
    %v91 = vsub.s32 %v78, %v90
    %v92 = vrot.slane %v58, %v91
    %v93 = vsel %vm83, %v92, %v88
    %vm94 = vcmask 1041409
    %v95 = vsel %vm94, %v93, %v84
    %vm96 = vcmask 130048
    %v97 = vsel %vm96, %v95, 0
    %99 = vmatprep.subr.mxu0 0.0
    %100 = vmatpush1.msra.mxu0 %v59
    %101 = vmatprep.subr.mxu0 0.0
    %102 = vmatpush1.msra.mxu0 %v60
    %103 = vmatprep.subr.mxu0 0.0
    %104 = vmatpush1.msra.mxu0 0.0
    %105 = vmatprep.subr.mxu0 0.0
    %106 = vmatpush1.msra.mxu0 0.0
    %107 = vmatprep.subr.mxu0 0.0
    %108 = vmatpush1.msra.mxu0 0.0
    %109 = vmatprep.subr.mxu0 0.0
    %110 = vmatpush1.msra.mxu0 0.0
    %111 = vmatprep.subr.mxu0 0.0
    %112 = vmatpush1.msra.mxu0 0.0
    %113 = vmatprep.subr.mxu0 0.0
    %114 = vmatpush1.msra.mxu0 0.0
    %115 = vmatprep.subr.mxu0 0.0
    %116 = vmatpush1.msra.mxu0 0.0
    %117 = vmatprep.subr.mxu0 0.0
    %118 = vmatpush1.msra.mxu0 0.0
    %119 = vmatprep.subr.mxu0 0.0
    %120 = vmatpush1.msra.mxu0 0.0
    %121 = vmatprep.subr.mxu0 0.0
    %122 = vmatpush1.msra.mxu0 0.0
    %123 = vmatprep.subr.mxu0 0.0
    %124 = vmatpush1.msra.mxu0 0.0
    %125 = vmatprep.subr.mxu0 0.0
    %126 = vmatpush1.msra.mxu0 0.0
    %127 = vmatprep.subr.mxu0 0.0
    %128 = vmatpush1.msra.mxu0 0.0
    %129 = vmatprep.subr.mxu0 0.0
    %130 = vmatpush1.msra.mxu0 0.0
    %131 = vmatprep.subr.mxu0 0.0
    %132 = vmatpush1.msra.mxu0 0.0
    %133 = vmatprep.subr.mxu0 0.0
    %134 = vmatpush1.msra.mxu0 0.0
    %135 = vmatprep.subr.mxu0 0.0
    %136 = vmatpush1.msra.mxu0 0.0
    %137 = vmatprep.subr.mxu0 0.0
    %138 = vmatpush1.msra.mxu0 0.0
    %139 = vmatprep.subr.mxu0 0.0
    %140 = vmatpush1.msra.mxu0 0.0
    %141 = vmatprep.subr.mxu0 0.0
    %142 = vmatpush1.msra.mxu0 0.0
    %143 = vmatprep.subr.mxu0 0.0
    %144 = vmatpush1.msra.mxu0 0.0
    %145 = vmatprep.subr.mxu0 0.0
    %146 = vmatpush1.msra.mxu0 0.0
    %147 = vmatprep.subr.mxu0 0.0
    %148 = vmatpush1.msra.mxu0 0.0
    %149 = vmatprep.subr.mxu0 0.0
    %150 = vmatpush1.msra.mxu0 0.0
    %151 = vmatprep.subr.mxu0 0.0
    %152 = vmatpush1.msra.mxu0 0.0
    %153 = vmatprep.subr.mxu0 0.0
    %154 = vmatpush1.msra.mxu0 0.0
    %155 = vmatprep.subr.mxu0 0.0
    %156 = vmatpush1.msra.mxu0 0.0
    %157 = vmatprep.subr.mxu0 0.0
    %158 = vmatpush1.msra.mxu0 0.0
    %159 = vmatprep.subr.mxu0 0.0
    %160 = vmatpush1.msra.mxu0 0.0
    %161 = vmatprep.subr.mxu0 0.0
    %162 = vmatpush1.msra.mxu0 0.0
    %163 = vmatprep.mubr.f32.mxu0 0.0
    %164 = vmatmul.mubr.f32.gmra.mrb[0].mxu0 %v97
    %v165 = vpop.f32.mrb[0].mxu0
    %v166 = vadd.f32 %v66, %v165
    %v167 = vpop.f32.mrb[0].mxu0
    %168 = vdwg.mxu0
    %v169 = vmax.f32 %v166, 0.0
    %v170 = vld [vmem:[%s3] sm:$0xff]
    %v171 = vld [vmem:[%s4] sm:$0x1]
    %v173 = vlaneseq
    %v174 = vshrl.u32 %v173, 7
    %v175 = vsub.s32 0, %v174
    %v176 = vrot.slane %v171, %v175
    %vm178 = vcmask 64512
    %v180 = vsel %vm178, %v169, 0
    %182 = vmatprep.subr.mxu0 0.0
    %183 = vmatpush1.msra.mxu0 %v170
    %184 = vmatprep.subr.mxu0 0.0
    %185 = vmatpush1.msra.mxu0 0.0
    %186 = vmatprep.subr.mxu0 0.0
    %187 = vmatpush1.msra.mxu0 0.0
    %188 = vmatprep.subr.mxu0 0.0
    %189 = vmatpush1.msra.mxu0 0.0
    %190 = vmatprep.subr.mxu0 0.0
    %191 = vmatpush1.msra.mxu0 0.0
    %192 = vmatprep.subr.mxu0 0.0
    %193 = vmatpush1.msra.mxu0 0.0
    %194 = vmatprep.subr.mxu0 0.0
    %195 = vmatpush1.msra.mxu0 0.0
    %196 = vmatprep.subr.mxu0 0.0
    %197 = vmatpush1.msra.mxu0 0.0
    %198 = vmatprep.subr.mxu0 0.0
    %199 = vmatpush1.msra.mxu0 0.0
    %200 = vmatprep.subr.mxu0 0.0
    %201 = vmatpush1.msra.mxu0 0.0
    %202 = vmatprep.subr.mxu0 0.0
    %203 = vmatpush1.msra.mxu0 0.0
    %204 = vmatprep.subr.mxu0 0.0
    %205 = vmatpush1.msra.mxu0 0.0
    %206 = vmatprep.subr.mxu0 0.0
    %207 = vmatpush1.msra.mxu0 0.0
    %208 = vmatprep.subr.mxu0 0.0
    %209 = vmatpush1.msra.mxu0 0.0
    %210 = vmatprep.subr.mxu0 0.0
    %211 = vmatpush1.msra.mxu0 0.0
    %212 = vmatprep.subr.mxu0 0.0
    %213 = vmatpush1.msra.mxu0 0.0
    %214 = vmatprep.subr.mxu0 0.0
    %215 = vmatpush1.msra.mxu0 0.0
    %216 = vmatprep.subr.mxu0 0.0
    %217 = vmatpush1.msra.mxu0 0.0
    %218 = vmatprep.subr.mxu0 0.0
    %219 = vmatpush1.msra.mxu0 0.0
    %220 = vmatprep.subr.mxu0 0.0
    %221 = vmatpush1.msra.mxu0 0.0
    %222 = vmatprep.subr.mxu0 0.0
    %223 = vmatpush1.msra.mxu0 0.0
    %224 = vmatprep.subr.mxu0 0.0
    %225 = vmatpush1.msra.mxu0 0.0
    %226 = vmatprep.subr.mxu0 0.0
    %227 = vmatpush1.msra.mxu0 0.0
    %228 = vmatprep.subr.mxu0 0.0
    %229 = vmatpush1.msra.mxu0 0.0
    %230 = vmatprep.subr.mxu0 0.0
    %231 = vmatpush1.msra.mxu0 0.0
    %232 = vmatprep.subr.mxu0 0.0
    %233 = vmatpush1.msra.mxu0 0.0
    %234 = vmatprep.subr.mxu0 0.0
    %235 = vmatpush1.msra.mxu0 0.0
    %236 = vmatprep.subr.mxu0 0.0
    %237 = vmatpush1.msra.mxu0 0.0
    %238 = vmatprep.subr.mxu0 0.0
    %239 = vmatpush1.msra.mxu0 0.0
    %240 = vmatprep.subr.mxu0 0.0
    %241 = vmatpush1.msra.mxu0 0.0
    %242 = vmatprep.subr.mxu0 0.0
    %243 = vmatpush1.msra.mxu0 0.0
    %244 = vmatprep.subr.mxu0 0.0
    %245 = vmatpush1.msra.mxu0 0.0
    %246 = vmatprep.mubr.f32.mxu0 0.0
    %247 = vmatmul.mubr.f32.gmra.mrb[0].mxu0 %v180
    %v248 = vpop.f32.mrb[0].mxu0
    %v249 = vadd.f32 %v176, %v248
    %v250 = vpop.f32.mrb[0].mxu0
    %251 = vdwg.mxu0
    %v252 = vmul.f32 %v249, 0.16666667
    %v253 = vadd.f32 %v252, 0.5
    %v254 = vmax.f32 %v253, 0.0
    %v255 = vmin.f32 %v254, 1.0
    %v256 = vlaneseq
    %v257 = vshrl.u32 %v256, 7
    %v258 = vsub.s32 0, %v257
    %v259 = vrot.slane %v255, %v258
    %261 = vbcast.lane.b32.xlu0 %v259, 256
    %v262 = vpop.permute.xlu0 %261
    %s264 = sor.u32 256, 8
    %265 = vbcast.lane.b32.xlu0 %v259, %s264
    %v266 = vpop.permute.xlu0 %265
    %v267 = vlaneseq
    %v268 = vshrl.u32 %v267, 7
    %v269 = vsub.s32 1, %v268
    %v270 = vrot.slane %v255, %v269
    %272 = vbcast.lane.b32.xlu0 %v270, 256
    %v273 = vpop.permute.xlu0 %272
    %s275 = sor.u32 256, 8
    %276 = vbcast.lane.b32.xlu0 %v270, %s275
    %v277 = vpop.permute.xlu0 %276
    %v278 = vmul.f32 %v35, %v262
    %v279 = vmul.f32 %v36, %v262
    %v280 = vmul.f32 %v37, %v266
    %v281 = vmul.f32 %v38, %v266
    %v282 = vmul.f32 %v39, %v273
    %v283 = vmul.f32 %v40, %v273
    %v284 = vmul.f32 %v41, %v277
    %v285 = vmul.f32 %v42, %v277
    %286 = vst [vmem:[#allocation5] sm:$0xff] %v278
    %287 = vst [vmem:[#allocation5 + $0x8] sm:$0xff] %v279
    %288 = vst [vmem:[#allocation5 + $0x10] sm:$0xff] %v280
    %289 = vst [vmem:[#allocation5 + $0x18] sm:$0xff] %v281
    %290 = vst [vmem:[#allocation5 + $0x20] sm:$0xff] %v282
    %291 = vst [vmem:[#allocation5 + $0x28] sm:$0xff] %v283
    %292 = vst [vmem:[#allocation5 + $0x30] sm:$0xff] %v284
    %293 = vst [vmem:[#allocation5 + $0x38] sm:$0xff] %v285
    // Predicated region
    $region26: #{tpu_custom_call.1} parent=1 // pred_check
      _
    $region27: #{tpu_custom_call.1} parent=1 // pred_check_branch
      %295 = sbr.rel (0) target = $region29
    $region28: #{tpu_custom_call.1} parent=1 // pred_region
      %s297 = ssub.s32 1024, 1024
      %298 = vsyncadd [#allocation4], %s297
      %s299 = sshll.u32 [#allocation5], 4
      %s300 = int_to_ptr.vmem [resolvable:$true] %s299
      %305 = dma.vmem_to_hbm [thread:$0]  %s300, 1024, %s5, [#allocation4], 256, 256, 16
    $region29: #{tpu_custom_call.1} parent=1 // pred_fallthru
      _
    // Predicated region
    $region30: #{tpu_custom_call.1} parent=1 // pred_check
      _
    $region31: #{tpu_custom_call.1} parent=1 // pred_check_branch
      %307 = sbr.rel (0) target = $region33
    $region32: #{tpu_custom_call.1} parent=1 // pred_region
      %308 = dma.done [#allocation4], 1024
    $region33: #{tpu_custom_call.1} parent=1 // pred_fallthru
      _
    %309 = vsyncpa [#allocation3], 1
    %310 = vsyncpa [#allocation4], 1

// kernel: tpu_custom_call.1
$region0: #{tpu_custom_call.1}
  #allocation0 [shape = 'u32[]', space=smem, size = 0x4, offset = 0x4, fixed_abs, tag = 'smem constant byte address 0x4 - core index']
  #allocation1 [shape = 'u32[144,128]{1,0:T(1,128)}', space=vmem, size = 0x12000, scoped, tag = 'internal scratch']
  %s0 = inlined_call_operand.hbm [shape: f32[2,16,256], index: 0, kind: input, shape index: {}]
  %s1 = inlined_call_operand.vmem [shape: f32[16,8], index: 1, kind: input, shape index: {}]
  %s2 = inlined_call_operand.vmem [shape: f32[1,8], index: 2, kind: input, shape index: {}]
  %s3 = inlined_call_operand.vmem [shape: f32[8,16], index: 3, kind: input, shape index: {}]
  %s4 = inlined_call_operand.vmem [shape: f32[1,16], index: 4, kind: input, shape index: {}]
  %s5 = inlined_call_operand.hbm [shape: f32[2,16,256], index: 5, kind: output, shape index: {}]
  %s6 = sld [smem:[#allocation0]]
  $region34: #{tpu_custom_call.1} parent=0
    _
  %s8 = ssub.s32 1, %s6
  %s9 = scalar_select 0, %s8, %s6
  $region1: #{tpu_custom_call.1} parent=0
    #allocation2 [shape = 'u8[32768]{0}', space=vmem, size = 0x8000, scoped, tag = 'input window, operand 0, single buffered']
    #allocation3 [shape = 's32[1]{0}', space=sflag, size = 0x4, scoped, tag = 'scoped memory for tpu_custom_call.1']
    #allocation4 [shape = 's32[1]{0}', space=sflag, size = 0x4, scoped, tag = 'scoped memory for tpu_custom_call.1']
    #allocation5 [shape = 'u8[32768]{0}', space=vmem, size = 0x8000, scoped, tag = 'output window, operand 0, single buffered']
    %10 = vsyncpa [#allocation3], 0
    %11 = vsyncpa [#allocation4], 0
    // Predicated region
    $region2: #{tpu_custom_call.1} parent=1 // pred_check
      _
    $region3: #{tpu_custom_call.1} parent=1 // pred_check_branch
      %13 = sbr.rel (0) target = $region5
    $region4: #{tpu_custom_call.1} parent=1 // pred_region
      %s15 = ssub.s32 1024, 1024
      %16 = vsyncadd [#allocation3], %s15
      %s17 = sshll.u32 [#allocation2], 4
      %s18 = int_to_ptr.vmem [resolvable:$true] %s17
      %23 = dma.hbm_to_vmem [thread:$0]  %s0, 1024, %s18, [#allocation3], 256, 256, 16
    $region5: #{tpu_custom_call.1} parent=1 // pred_fallthru
      _
    // Predicated region
    $region6: #{tpu_custom_call.1} parent=1 // pred_check
      _
    $region7: #{tpu_custom_call.1} parent=1 // pred_check_branch
      %25 = sbr.rel (0) target = $region9
    $region8: #{tpu_custom_call.1} parent=1 // pred_region
      _
    $region9: #{tpu_custom_call.1} parent=1 // pred_fallthru
      _
    // Predicated region
    $region10: #{tpu_custom_call.1} parent=1 // pred_check
      _
    $region11: #{tpu_custom_call.1} parent=1 // pred_check_branch
      %27 = sbr.rel (0) target = $region13
    $region12: #{tpu_custom_call.1} parent=1 // pred_region
      _
    $region13: #{tpu_custom_call.1} parent=1 // pred_fallthru
      _
    // Predicated region
    $region14: #{tpu_custom_call.1} parent=1 // pred_check
      _
    $region15: #{tpu_custom_call.1} parent=1 // pred_check_branch
      %29 = sbr.rel (0) target = $region17
    $region16: #{tpu_custom_call.1} parent=1 // pred_region
      _
    $region17: #{tpu_custom_call.1} parent=1 // pred_fallthru
      _
    // Predicated region
    $region18: #{tpu_custom_call.1} parent=1 // pred_check
      _
    $region19: #{tpu_custom_call.1} parent=1 // pred_check_branch
      %31 = sbr.rel (0) target = $region21
    $region20: #{tpu_custom_call.1} parent=1 // pred_region
      _
    $region21: #{tpu_custom_call.1} parent=1 // pred_fallthru
      _
    // Predicated region
    $region22: #{tpu_custom_call.1} parent=1 // pred_check
      _
    $region23: #{tpu_custom_call.1} parent=1 // pred_check_branch
      %33 = sbr.rel (0) target = $region25
    $region24: #{tpu_custom_call.1} parent=1 // pred_region
      %34 = dma.done [#allocation3], 1024
    $region25: #{tpu_custom_call.1} parent=1 // pred_fallthru
      _
    %v35 = vld [vmem:[#allocation2] sm:$0xff]
    %v36 = vld [vmem:[#allocation2 + $0x8] sm:$0xff]
    %v37 = vld [vmem:[#allocation2 + $0x10] sm:$0xff]
    %v38 = vld [vmem:[#allocation2 + $0x18] sm:$0xff]
    %v39 = vld [vmem:[#allocation2 + $0x20] sm:$0xff]
    %v40 = vld [vmem:[#allocation2 + $0x28] sm:$0xff]
    %v41 = vld [vmem:[#allocation2 + $0x30] sm:$0xff]
    %v42 = vld [vmem:[#allocation2 + $0x38] sm:$0xff]
    %v43 = vadd.f32 %v35, %v36
    %44 = vadd.xlane.f32.xlu0 %v43
    %v45 = vpop.xlane.xlu0 %44
    %v46 = vadd.f32 %v37, %v38
    %47 = vadd.xlane.f32.xlu0 %v46
    %v48 = vpop.xlane.xlu0 %47
    %v49 = vadd.f32 %v39, %v40
    %50 = vadd.xlane.f32.xlu0 %v49
    %v51 = vpop.xlane.xlu0 %50
    %v52 = vadd.f32 %v41, %v42
    %53 = vadd.xlane.f32.xlu0 %v52
    %v54 = vpop.xlane.xlu0 %53
    %v55 = vmul.f32 %v45, 0.00390625
    %v56 = vmul.f32 %v48, 0.00390625
    %v57 = vmul.f32 %v51, 0.00390625
    %v58 = vmul.f32 %v54, 0.00390625
    %v59 = vld [vmem:[%s1] sm:$0xff]
    %v60 = vld [vmem:[%s1 + $0x8] sm:$0xff]
    %v61 = vld [vmem:[%s2] sm:$0x1]
    %v63 = vlaneseq
    %v64 = vshrl.u32 %v63, 7
    %v65 = vsub.s32 0, %v64
    %v66 = vrot.slane %v61, %v65
    %v72 = vlaneseq
    %v73 = vand.u32 %v72, 127
    %v74 = vlaneseq
    %v75 = vshrl.u32 %v74, 7
    %v76 = vsub.s32 %v73, %v75
    %v77 = vrot.slane %v55, %v76
    %v78 = vadd.s32 %v73, 4294967288
    %v79 = vlaneseq
    %v80 = vshrl.u32 %v79, 7
    %v81 = vsub.s32 %v78, %v80
    %v82 = vrot.slane %v56, %v81
    %vm83 = vcmask 130112
    %v84 = vsel %vm83, %v82, %v77
    %v85 = vlaneseq
    %v86 = vshrl.u32 %v85, 7
    %v87 = vsub.s32 %v73, %v86
    %v88 = vrot.slane %v57, %v87
    %v89 = vlaneseq
    %v90 = vshrl.u32 %v89, 7
    %v91 = vsub.s32 %v78, %v90
    %v92 = vrot.slane %v58, %v91
    %v93 = vsel %vm83, %v92, %v88
    %vm94 = vcmask 1041409
    %v95 = vsel %vm94, %v93, %v84
    %vm96 = vcmask 130048
    %v97 = vsel %vm96, %v95, 0
    %99 = vmatprep.subr.mxu0 0.0
    %100 = vmatpush1.msra.mxu0 %v59
    %101 = vmatprep.subr.mxu0 0.0
    %102 = vmatpush1.msra.mxu0 %v60
    %103 = vmatprep.subr.mxu0 0.0
    %104 = vmatpush1.msra.mxu0 0.0
    %105 = vmatprep.subr.mxu0 0.0
    %106 = vmatpush1.msra.mxu0 0.0
    %107 = vmatprep.subr.mxu0 0.0
    %108 = vmatpush1.msra.mxu0 0.0
    %109 = vmatprep.subr.mxu0 0.0
    %110 = vmatpush1.msra.mxu0 0.0
    %111 = vmatprep.subr.mxu0 0.0
    %112 = vmatpush1.msra.mxu0 0.0
    %113 = vmatprep.subr.mxu0 0.0
    %114 = vmatpush1.msra.mxu0 0.0
    %115 = vmatprep.subr.mxu0 0.0
    %116 = vmatpush1.msra.mxu0 0.0
    %117 = vmatprep.subr.mxu0 0.0
    %118 = vmatpush1.msra.mxu0 0.0
    %119 = vmatprep.subr.mxu0 0.0
    %120 = vmatpush1.msra.mxu0 0.0
    %121 = vmatprep.subr.mxu0 0.0
    %122 = vmatpush1.msra.mxu0 0.0
    %123 = vmatprep.subr.mxu0 0.0
    %124 = vmatpush1.msra.mxu0 0.0
    %125 = vmatprep.subr.mxu0 0.0
    %126 = vmatpush1.msra.mxu0 0.0
    %127 = vmatprep.subr.mxu0 0.0
    %128 = vmatpush1.msra.mxu0 0.0
    %129 = vmatprep.subr.mxu0 0.0
    %130 = vmatpush1.msra.mxu0 0.0
    %131 = vmatprep.subr.mxu0 0.0
    %132 = vmatpush1.msra.mxu0 0.0
    %133 = vmatprep.subr.mxu0 0.0
    %134 = vmatpush1.msra.mxu0 0.0
    %135 = vmatprep.subr.mxu0 0.0
    %136 = vmatpush1.msra.mxu0 0.0
    %137 = vmatprep.subr.mxu0 0.0
    %138 = vmatpush1.msra.mxu0 0.0
    %139 = vmatprep.subr.mxu0 0.0
    %140 = vmatpush1.msra.mxu0 0.0
    %141 = vmatprep.subr.mxu0 0.0
    %142 = vmatpush1.msra.mxu0 0.0
    %143 = vmatprep.subr.mxu0 0.0
    %144 = vmatpush1.msra.mxu0 0.0
    %145 = vmatprep.subr.mxu0 0.0
    %146 = vmatpush1.msra.mxu0 0.0
    %147 = vmatprep.subr.mxu0 0.0
    %148 = vmatpush1.msra.mxu0 0.0
    %149 = vmatprep.subr.mxu0 0.0
    %150 = vmatpush1.msra.mxu0 0.0
    %151 = vmatprep.subr.mxu0 0.0
    %152 = vmatpush1.msra.mxu0 0.0
    %153 = vmatprep.subr.mxu0 0.0
    %154 = vmatpush1.msra.mxu0 0.0
    %155 = vmatprep.subr.mxu0 0.0
    %156 = vmatpush1.msra.mxu0 0.0
    %157 = vmatprep.subr.mxu0 0.0
    %158 = vmatpush1.msra.mxu0 0.0
    %159 = vmatprep.subr.mxu0 0.0
    %160 = vmatpush1.msra.mxu0 0.0
    %161 = vmatprep.subr.mxu0 0.0
    %162 = vmatpush1.msra.mxu0 0.0
    %163 = vmatprep.mubr.f32.mxu0 0.0
    %164 = vmatmul.mubr.f32.gmra.mrb[0].mxu0 %v97
    %v165 = vpop.f32.mrb[0].mxu0
    %v166 = vadd.f32 %v66, %v165
    %v167 = vpop.f32.mrb[0].mxu0
    %168 = vdwg.mxu0
    %v169 = vmax.f32 %v166, 0.0
    %v170 = vld [vmem:[%s3] sm:$0xff]
    %v171 = vld [vmem:[%s4] sm:$0x1]
    %v173 = vlaneseq
    %v174 = vshrl.u32 %v173, 7
    %v175 = vsub.s32 0, %v174
    %v176 = vrot.slane %v171, %v175
    %vm178 = vcmask 64512
    %v180 = vsel %vm178, %v169, 0
    %182 = vmatprep.subr.mxu0 0.0
    %183 = vmatpush1.msra.mxu0 %v170
    %184 = vmatprep.subr.mxu0 0.0
    %185 = vmatpush1.msra.mxu0 0.0
    %186 = vmatprep.subr.mxu0 0.0
    %187 = vmatpush1.msra.mxu0 0.0
    %188 = vmatprep.subr.mxu0 0.0
    %189 = vmatpush1.msra.mxu0 0.0
    %190 = vmatprep.subr.mxu0 0.0
    %191 = vmatpush1.msra.mxu0 0.0
    %192 = vmatprep.subr.mxu0 0.0
    %193 = vmatpush1.msra.mxu0 0.0
    %194 = vmatprep.subr.mxu0 0.0
    %195 = vmatpush1.msra.mxu0 0.0
    %196 = vmatprep.subr.mxu0 0.0
    %197 = vmatpush1.msra.mxu0 0.0
    %198 = vmatprep.subr.mxu0 0.0
    %199 = vmatpush1.msra.mxu0 0.0
    %200 = vmatprep.subr.mxu0 0.0
    %201 = vmatpush1.msra.mxu0 0.0
    %202 = vmatprep.subr.mxu0 0.0
    %203 = vmatpush1.msra.mxu0 0.0
    %204 = vmatprep.subr.mxu0 0.0
    %205 = vmatpush1.msra.mxu0 0.0
    %206 = vmatprep.subr.mxu0 0.0
    %207 = vmatpush1.msra.mxu0 0.0
    %208 = vmatprep.subr.mxu0 0.0
    %209 = vmatpush1.msra.mxu0 0.0
    %210 = vmatprep.subr.mxu0 0.0
    %211 = vmatpush1.msra.mxu0 0.0
    %212 = vmatprep.subr.mxu0 0.0
    %213 = vmatpush1.msra.mxu0 0.0
    %214 = vmatprep.subr.mxu0 0.0
    %215 = vmatpush1.msra.mxu0 0.0
    %216 = vmatprep.subr.mxu0 0.0
    %217 = vmatpush1.msra.mxu0 0.0
    %218 = vmatprep.subr.mxu0 0.0
    %219 = vmatpush1.msra.mxu0 0.0
    %220 = vmatprep.subr.mxu0 0.0
    %221 = vmatpush1.msra.mxu0 0.0
    %222 = vmatprep.subr.mxu0 0.0
    %223 = vmatpush1.msra.mxu0 0.0
    %224 = vmatprep.subr.mxu0 0.0
    %225 = vmatpush1.msra.mxu0 0.0
    %226 = vmatprep.subr.mxu0 0.0
    %227 = vmatpush1.msra.mxu0 0.0
    %228 = vmatprep.subr.mxu0 0.0
    %229 = vmatpush1.msra.mxu0 0.0
    %230 = vmatprep.subr.mxu0 0.0
    %231 = vmatpush1.msra.mxu0 0.0
    %232 = vmatprep.subr.mxu0 0.0
    %233 = vmatpush1.msra.mxu0 0.0
    %234 = vmatprep.subr.mxu0 0.0
    %235 = vmatpush1.msra.mxu0 0.0
    %236 = vmatprep.subr.mxu0 0.0
    %237 = vmatpush1.msra.mxu0 0.0
    %238 = vmatprep.subr.mxu0 0.0
    %239 = vmatpush1.msra.mxu0 0.0
    %240 = vmatprep.subr.mxu0 0.0
    %241 = vmatpush1.msra.mxu0 0.0
    %242 = vmatprep.subr.mxu0 0.0
    %243 = vmatpush1.msra.mxu0 0.0
    %244 = vmatprep.subr.mxu0 0.0
    %245 = vmatpush1.msra.mxu0 0.0
    %246 = vmatprep.mubr.f32.mxu0 0.0
    %247 = vmatmul.mubr.f32.gmra.mrb[0].mxu0 %v180
    %v248 = vpop.f32.mrb[0].mxu0
    %v249 = vadd.f32 %v176, %v248
    %v250 = vpop.f32.mrb[0].mxu0
    %251 = vdwg.mxu0
    %v252 = vmul.f32 %v249, 0.16666667
    %v253 = vadd.f32 %v252, 0.5
    %v254 = vmax.f32 %v253, 0.0
    %v255 = vmin.f32 %v254, 1.0
    %v256 = vlaneseq
    %v257 = vshrl.u32 %v256, 7
    %v258 = vsub.s32 0, %v257
    %v259 = vrot.slane %v255, %v258
    %261 = vbcast.lane.b32.xlu0 %v259, 256
    %v262 = vpop.permute.xlu0 %261
    %s264 = sor.u32 256, 8
    %265 = vbcast.lane.b32.xlu0 %v259, %s264
    %v266 = vpop.permute.xlu0 %265
    %v267 = vlaneseq
    %v268 = vshrl.u32 %v267, 7
    %v269 = vsub.s32 1, %v268
    %v270 = vrot.slane %v255, %v269
    %272 = vbcast.lane.b32.xlu0 %v270, 256
    %v273 = vpop.permute.xlu0 %272
    %s275 = sor.u32 256, 8
    %276 = vbcast.lane.b32.xlu0 %v270, %s275
    %v277 = vpop.permute.xlu0 %276
    %v278 = vmul.f32 %v35, %v262
    %v279 = vmul.f32 %v36, %v262
    %v280 = vmul.f32 %v37, %v266
    %v281 = vmul.f32 %v38, %v266
    %v282 = vmul.f32 %v39, %v273
    %v283 = vmul.f32 %v40, %v273
    %v284 = vmul.f32 %v41, %v277
    %v285 = vmul.f32 %v42, %v277
    %286 = vst [vmem:[#allocation5] sm:$0xff] %v278
    %287 = vst [vmem:[#allocation5 + $0x8] sm:$0xff] %v279
    %288 = vst [vmem:[#allocation5 + $0x10] sm:$0xff] %v280
    %289 = vst [vmem:[#allocation5 + $0x18] sm:$0xff] %v281
    %290 = vst [vmem:[#allocation5 + $0x20] sm:$0xff] %v282
    %291 = vst [vmem:[#allocation5 + $0x28] sm:$0xff] %v283
    %292 = vst [vmem:[#allocation5 + $0x30] sm:$0xff] %v284
    %293 = vst [vmem:[#allocation5 + $0x38] sm:$0xff] %v285
    // Predicated region
    $region26: #{tpu_custom_call.1} parent=1 // pred_check
      _
    $region27: #{tpu_custom_call.1} parent=1 // pred_check_branch
      %295 = sbr.rel (0) target = $region29
    $region28: #{tpu_custom_call.1} parent=1 // pred_region
      %s297 = ssub.s32 1024, 1024
      %298 = vsyncadd [#allocation4], %s297
      %s299 = sshll.u32 [#allocation5], 4
      %s300 = int_to_ptr.vmem [resolvable:$true] %s299
      %305 = dma.vmem_to_hbm [thread:$0]  %s300, 1024, %s5, [#allocation4], 256, 256, 16
    $region29: #{tpu_custom_call.1} parent=1 // pred_fallthru
      _
    // Predicated region
    $region30: #{tpu_custom_call.1} parent=1 // pred_check
      _
    $region31: #{tpu_custom_call.1} parent=1 // pred_check_branch
      %307 = sbr.rel (0) target = $region33
    $region32: #{tpu_custom_call.1} parent=1 // pred_region
      %308 = dma.done [#allocation4], 1024
    $region33: #{tpu_custom_call.1} parent=1 // pred_fallthru
      _
    %309 = vsyncpa [#allocation3], 1
    %310 = vsyncpa [#allocation4], 1

</llo_original>
